<compile_context>
chip_gen: v5e
topology: v5e:2x2
jax: 0.10.0
libtpu: 0.0.40
codegen_flags: <defaults>
</compile_context>

<pallas_src>
import jax
import jax.numpy as jnp
from jax import lax
from jax.experimental import pallas as pl
from jax.experimental.pallas import tpu as pltpu

_MATMUL_DTYPE = jnp.bfloat16   # bf16 MXU path; epilogue stays f32.
_EPS = 1e-5                    # InstanceNorm2d default eps.
_NEG_SLOPE = 0.2               # LeakyReLU negative slope.


# ----------------------------- Pallas kernel --------------------------------
def _conv_block_kernel(x_ref, w_ref, o_ref):
    """One batch element per grid step.

    x_ref: (1, K, HW)   fused im2col, K = KH*KW*Cin, H*W on the lane axis
    w_ref: (Cout, K)    spectral-normalized conv weights (matching K order)
    o_ref: (1, Cout, HW)
    """
    # Convolution as a single matmul, f32 accumulation on the MXU.
    acc = jnp.dot(w_ref[...], x_ref[0], preferred_element_type=jnp.float32)

    # InstanceNorm2d (affine=False, biased variance) over the spatial axis.
    mean = jnp.mean(acc, axis=1, keepdims=True)
    var = jnp.mean(jnp.square(acc - mean), axis=1, keepdims=True)
    y = (acc - mean) * lax.rsqrt(var + _EPS)

    # LeakyReLU(0.2).
    y = jnp.where(y >= 0.0, y, _NEG_SLOPE * y)

    o_ref[0] = y.astype(o_ref.dtype)


# ------------------------------ JAX glue -------------------------------------
def _spectral_normalize(w_oihw, u, n_power_iterations=1, eps=1e-12):
    """Mimics torch.nn.utils.spectral_norm (one power iteration per forward).

    Note: PyTorch also writes the updated `u` back into a buffer in training
    mode; here the updated `u` is used for sigma but not returned (pure fwd).
    """
    cout = w_oihw.shape[0]
    w_mat = w_oihw.reshape(cout, -1)
    v = None
    for _ in range(n_power_iterations):
        v = w_mat.T @ u
        v = v / jnp.maximum(jnp.linalg.norm(v), eps)
        u = w_mat @ v
        u = u / jnp.maximum(jnp.linalg.norm(u), eps)
    sigma = u @ (w_mat @ v)
    return w_oihw / sigma


@jax.jit
def conv_block_forward(x_nchw, w_oihw, bias, u):
    """ConvBlock forward. x_nchw: (N, Cin, H, W); w_oihw: (Cout, Cin, KH, KW)."""
    del bias  # exactly cancelled by InstanceNorm2d(affine=False) mean subtraction
    n, cin, h, w = x_nchw.shape
    cout, _, kh, kw = w_oihw.shape
    pad = 1  # module default: kernel_size=3, stride=1, padding=1
    hw = h * w
    k_dim = kh * kw * cin

    # Spectral norm of the conv weight (parameter setup, plain JAX).
    w_sn = _spectral_normalize(w_oihw, u)

    # Stay in NCHW. Reflect-pad the spatial dims, cast once to bf16, and build
    # the fused im2col: K=(tap, cin) on sublanes, H*W on lanes.
    xp = jnp.pad(x_nchw, ((0, 0), (0, 0), (pad, pad), (pad, pad)), mode="reflect")
    xp = xp.astype(_MATMUL_DTYPE)
    taps = [xp[:, :, i:i + h, j:j + w] for i in range(kh) for j in range(kw)]
    xcols = jnp.stack(taps, axis=1).reshape(n, k_dim, hw)        # (N, K, HW)

    # Weights -> (Cout, K) with the same (tap, cin) K order.
    w_mat = jnp.transpose(w_sn, (0, 2, 3, 1)).reshape(cout, k_dim)
    w_mat = w_mat.astype(_MATMUL_DTYPE)

    out_flat = pl.pallas_call(
        _conv_block_kernel,
        out_shape=jax.ShapeDtypeStruct((n, cout, hw), x_nchw.dtype),
        grid=(n,),
        in_specs=[
            pl.BlockSpec((1, k_dim, hw), lambda b: (b, 0, 0)),   # im2col slab
            pl.BlockSpec((cout, k_dim), lambda b: (0, 0)),       # weights
        ],
        out_specs=pl.BlockSpec((1, cout, hw), lambda b: (b, 0, 0)),
        compiler_params=pltpu.CompilerParams(
            dimension_semantics=("parallel",)),
    )(xcols, w_mat)

    # (N, Cout, H*W) is already flattened NCHW: free reshape, no transpose.
    return out_flat.reshape(n, cout, h, w)


# ---------------------------- pure-JAX reference -----------------------------
def _reference(x_nchw, w_oihw, bias, u):
    w_sn = _spectral_normalize(w_oihw, u)
    xp = jnp.pad(x_nchw, ((0, 0), (0, 0), (1, 1), (1, 1)), mode="reflect")
    y = lax.conv_general_dilated(
        xp, w_sn, window_strides=(1, 1), padding="VALID",
        dimension_numbers=("NCHW", "OIHW", "NCHW"))
    y = y + bias[None, :, None, None]
    mean = y.mean(axis=(2, 3), keepdims=True)
    var = jnp.mean(jnp.square(y - mean), axis=(2, 3), keepdims=True)
    yn = (y - mean) / jnp.sqrt(var + 1e-5)
    return jnp.where(yn >= 0, yn, 0.2 * yn)


# --------------------------------- main ---------------------------------------
if __name__ == "__main__":
    # ConvBlock(in_channels=4, out_channels=8, kernel_size=3, stride=1, padding=1)
    N, CIN, COUT, H, W, K = 2, 4, 8, 16, 16, 3

    key = jax.random.PRNGKey(0)
    kx, kw_, kb, ku = jax.random.split(key, 4)

    x = jax.random.normal(kx, (N, CIN, H, W), dtype=jnp.float32)
    weight = jax.random.normal(kw_, (COUT, CIN, K, K), dtype=jnp.float32) * 0.1
    bias = jax.random.normal(kb, (COUT,), dtype=jnp.float32) * 0.1
    # spectral_norm's left singular vector estimate (normalized init).
    u0 = jax.random.normal(ku, (COUT,), dtype=jnp.float32)
    u0 = u0 / jnp.linalg.norm(u0)

    out = jax.block_until_ready(conv_block_forward(x, weight, bias, u0))
    ref = jax.block_until_ready(_reference(x, weight, bias, u0))

    assert out.shape == (N, COUT, H, W), out.shape
    # Kernel uses bf16 matmul operands (f32 accumulation); reference is full f32,
    # so compare with a bf16-appropriate tolerance.
    max_err = float(jnp.max(jnp.abs(out - ref)))
    assert jnp.allclose(out, ref, atol=3e-2, rtol=3e-2), max_err

    print("KERNEL_OK")
</pallas_src>

<mosaic_0001>
module attributes {stable_mosaic.version = 11 : i64} {
  func.func @_conv_block_kernel(%arg0: i32, %arg1: memref<1x36x256xbf16, #tpu.memory_space<vmem>>, %arg2: memref<8x36xbf16, #tpu.memory_space<vmem>>, %arg3: memref<1x8x256xf32, #tpu.memory_space<vmem>>) attributes {dimension_semantics = [#tpu.dimension_semantics<parallel>], iteration_bounds = array<i64: 2>, scalar_prefetch = 0 : i64, scratch_operands = 0 : i64, tpu.core_type = #tpu.core_type<tc>, window_params = [{transform_indices = @transform_0, window_bounds = array<i64: 1, 36, 256>}, {pipeline_mode = #tpu.pipeline_mode<synchronous>, transform_indices = @transform_1, window_bounds = array<i64: 8, 36>}, {transform_indices = @transform_2, window_bounds = array<i64: 1, 8, 256>}]} {
    %c0 = arith.constant 0 : index
    %c0_0 = arith.constant 0 : index
    %0 = vector.load %arg2[%c0, %c0_0] : memref<8x36xbf16, #tpu.memory_space<vmem>>, vector<8x36xbf16>
    %c0_1 = arith.constant 0 : index
    %c0_2 = arith.constant 0 : index
    %c0_3 = arith.constant 0 : index
    %1 = vector.load %arg1[%c0_1, %c0_2, %c0_3] : memref<1x36x256xbf16, #tpu.memory_space<vmem>>, vector<1x36x256xbf16>
    %2 = vector.shape_cast %1 : vector<1x36x256xbf16> to vector<36x256xbf16>
    %cst = arith.constant dense<0.000000e+00> : vector<8x256xf32>
    %3 = tpu.matmul %0, %2, %cst {dimension_numbers = #tpu.dot_dimension_numbers<[1], [0], [0], [1], [0, 0, 1, 1], [], []>} : vector<8x36xbf16>, vector<36x256xbf16>, vector<8x256xf32> -> vector<8x256xf32>
    %cst_4 = arith.constant dense<0.000000e+00> : vector<8xf32>
    %4 = vector.multi_reduction <add>, %3, %cst_4 [1] : vector<8x256xf32> to vector<8xf32>
    %5 = vector.shape_cast %4 : vector<8xf32> to vector<8x1xf32>
    %cst_5 = arith.constant 2.560000e+02 : f32
    %6 = vector.broadcast %cst_5 : f32 to vector<8x1xf32>
    %7 = arith.divf %5, %6 : vector<8x1xf32>
    %8 = vector.broadcast %7 : vector<8x1xf32> to vector<8x256xf32>
    %9 = arith.subf %3, %8 : vector<8x256xf32>
    %10 = arith.mulf %9, %9 : vector<8x256xf32>
    %cst_6 = arith.constant dense<0.000000e+00> : vector<8xf32>
    %11 = vector.multi_reduction <add>, %10, %cst_6 [1] : vector<8x256xf32> to vector<8xf32>
    %12 = vector.shape_cast %11 : vector<8xf32> to vector<8x1xf32>
    %cst_7 = arith.constant 2.560000e+02 : f32
    %13 = vector.broadcast %cst_7 : f32 to vector<8x1xf32>
    %14 = arith.divf %12, %13 : vector<8x1xf32>
    %15 = vector.broadcast %7 : vector<8x1xf32> to vector<8x256xf32>
    %16 = arith.subf %3, %15 : vector<8x256xf32>
    %cst_8 = arith.constant 9.99999974E-6 : f32
    %17 = vector.broadcast %cst_8 : f32 to vector<8x1xf32>
    %18 = arith.addf %14, %17 : vector<8x1xf32>
    %19 = math.rsqrt %18 : vector<8x1xf32>
    %20 = vector.broadcast %19 : vector<8x1xf32> to vector<8x256xf32>
    %21 = arith.mulf %16, %20 : vector<8x256xf32>
    %cst_9 = arith.constant 0.000000e+00 : f32
    %22 = vector.broadcast %cst_9 : f32 to vector<8x256xf32>
    %23 = arith.cmpf oge, %21, %22 : vector<8x256xf32>
    %cst_10 = arith.constant 2.000000e-01 : f32
    %24 = vector.broadcast %cst_10 : f32 to vector<8x256xf32>
    %25 = arith.mulf %24, %21 : vector<8x256xf32>
    %26 = arith.select %23, %21, %25 : vector<8x256xi1>, vector<8x256xf32>
    %c0_11 = arith.constant 0 : index
    %c0_12 = arith.constant 0 : index
    %c0_13 = arith.constant 0 : index
    %27 = vector.load %arg3[%c0_11, %c0_12, %c0_13] : memref<1x8x256xf32, #tpu.memory_space<vmem>>, vector<1x8x256xf32>
    %28 = vector.shape_cast %27 : vector<1x8x256xf32> to vector<8x256xf32>
    %29 = vector.shape_cast %26 : vector<8x256xf32> to vector<1x8x256xf32>
    tpu.vector_store %arg3[%c0_11, %c0_12, %c0_13], %29 {strides = array<i32>} : memref<1x8x256xf32, #tpu.memory_space<vmem>>, vector<1x8x256xf32>,
    return
  }
  func.func @transform_0(%arg0: i32) -> (i32, i32, i32) {
    %c0_i32 = arith.constant 0 : i32
    %c0_i32_0 = arith.constant 0 : i32
    %c0_i32_1 = arith.constant 0 : i32
    return %arg0, %c0_i32, %c0_i32_0 : i32, i32, i32
  }
  func.func @transform_1(%arg0: i32) -> (i32, i32) {
    %c0_i32 = arith.constant 0 : i32
    %c0_i32_0 = arith.constant 0 : i32
    %c0_i32_1 = arith.constant 0 : i32
    return %c0_i32, %c0_i32_0 : i32, i32
  }
  func.func @transform_2(%arg0: i32) -> (i32, i32, i32) {
    %c0_i32 = arith.constant 0 : i32
    %c0_i32_0 = arith.constant 0 : i32
    %c0_i32_1 = arith.constant 0 : i32
    return %arg0, %c0_i32, %c0_i32_0 : i32, i32, i32
  }
}

</mosaic_0001>

<llo_original>
// kernel: conv_block_forward.1
$region0: #{conv_block_forward.1}
  #allocation0 [shape = 'u32[]', space=smem, size = 0x4, offset = 0x4, fixed_abs, tag = 'smem constant byte address 0x4 - core index']
  #allocation1 [shape = 'u32[72,128]{1,0:T(1,128)}', space=vmem, size = 0x9000, scoped, tag = 'internal scratch']
  %s0 = inlined_call_operand.vmem [shape: bf16[2,36,256], index: 0, kind: input, shape index: {}]
  %s1 = inlined_call_operand.vmem [shape: bf16[8,36], index: 1, kind: input, shape index: {}]
  %s2 = inlined_call_operand.vmem [shape: f32[2,8,256], index: 2, kind: output, shape index: {}]
  %s3 = sld [smem:[#allocation0]]
  $region41: #{conv_block_forward.1} parent=0
    _
  %s5 = ssub.s32 1, %s3
  %s6 = scalar_select 0, %s5, %s3
  loop: start=0, step=1, limit=4
  $region2: #{conv_block_forward.1} parent=0 // loop_pre_header
    _
  $region3: #{conv_block_forward.1} parent=0 // loop_header
    %s8 = sphi 0, %s12
    %p9 = scmp.ge.s32.totalorder %s8, 4
    %s18 = sphi 0, %s20
    %s21 = sphi 0, %s18
    %s22 = sphi 0, %s21
    %s38 = sphi 0, %s22
    %s42 = sphi 0, %s42
    %s44 = sphi 0, %s42
    %s45 = sphi 0, %s44
    %s59 = sphi 0, %s45
    %s65 = sphi 0, %s67
    %s68 = sphi 0, %s65
    %s69 = sphi 0, %s68
    %s85 = sphi 0, %s69
  $region4: #{conv_block_forward.1} parent=0 // loop_header_branch
    %11 = sbr.rel (%p9) target = $region8
  $region5: #{conv_block_forward.1} parent=0 // loop_body
    %s13 = ssub.s32 %s8, 1
    %s14 = ssub.s32 %s8, 2
    %s15 = sadd.s32 %s8, 1
    %s16 = ssub.s32 %s8, %s15
    %p17 = scmp.eq.s32.totalorder %s16, 0
    %s19 = sadd.s32 %s18, 1
    %s20 = scalar_select %p17, %s18, %s19
    %p23 = pneg %p17
    %p24 = scmp.eq.s32.totalorder %s8, 1
    %p25 = por %p23, %p24
    %p26 = scmp.ne.s32.totalorder %s18, %s21
    %p27 = scmp.eq.s32.totalorder %s8, 0
    %p28 = por %p26, %p27
    %p29 = scmp.ne.s32.totalorder %s18, %s21
    %p30 = scmp.eq.s32.totalorder %s13, 1
    %p31 = por %p29, %p30
    %p32 = scmp.ne.s32.totalorder %s21, %s22
    %p33 = scmp.eq.s32.totalorder %s13, 0
    %p34 = por %p32, %p33
    %p35 = scmp.ne.s32.totalorder %s21, %s22
    %p36 = scmp.eq.s32.totalorder %s14, 1
    %p37 = por %p35, %p36
    %p39 = scmp.ne.s32.totalorder %s22, %s38
    %p40 = scmp.eq.s32.totalorder %s14, 0
    %p41 = por %p39, %p40
    %s43 = sadd.s32 %s42, 1
    %p46 = scmp.eq.s32.totalorder %s8, 1
    %p47 = scmp.ne.s32.totalorder %s42, %s44
    %p48 = scmp.eq.s32.totalorder %s8, 0
    %p49 = por %p47, %p48
    %p50 = scmp.ne.s32.totalorder %s42, %s44
    %p51 = scmp.eq.s32.totalorder %s13, 1
    %p52 = por %p50, %p51
    %p53 = scmp.ne.s32.totalorder %s44, %s45
    %p54 = scmp.eq.s32.totalorder %s13, 0
    %p55 = por %p53, %p54
    %p56 = scmp.ne.s32.totalorder %s44, %s45
    %p57 = scmp.eq.s32.totalorder %s14, 1
    %p58 = por %p56, %p57
    %p60 = scmp.ne.s32.totalorder %s45, %s59
    %p61 = scmp.eq.s32.totalorder %s14, 0
    %p62 = por %p60, %p61
    %s63 = ssub.s32 %s8, %s15
    %p64 = scmp.eq.s32.totalorder %s63, 0
    %s66 = sadd.s32 %s65, 1
    %s67 = scalar_select %p64, %s65, %s66
    %p70 = pneg %p64
    %p71 = scmp.eq.s32.totalorder %s8, 1
    %p72 = por %p70, %p71
    %p73 = scmp.ne.s32.totalorder %s65, %s68
    %p74 = scmp.eq.s32.totalorder %s8, 0
    %p75 = por %p73, %p74
    %p76 = scmp.ne.s32.totalorder %s65, %s68
    %p77 = scmp.eq.s32.totalorder %s13, 1
    %p78 = por %p76, %p77
    %p79 = scmp.ne.s32.totalorder %s68, %s69
    %p80 = scmp.eq.s32.totalorder %s13, 0
    %p81 = por %p79, %p80
    %p82 = scmp.ne.s32.totalorder %s68, %s69
    %p83 = scmp.eq.s32.totalorder %s14, 1
    %p84 = por %p82, %p83
    %p86 = scmp.ne.s32.totalorder %s69, %s85
    %p87 = scmp.eq.s32.totalorder %s14, 0
    %p88 = por %p86, %p87
    %p89 = scmp.le.s32.totalorder 1, %s8
    %p90 = scmp.lt.s32.totalorder %s8, 3
    %p91 = pnand %p89, %p90
    %p92 = pneg %p91
    // Predicated region
    $region9: #{conv_block_forward.1} parent=5 // pred_check
      _
    $region10: #{conv_block_forward.1} parent=5 // pred_check_branch
      %94 = sbr.rel (%p91) target = $region12
    $region11: #{conv_block_forward.1} parent=5 // pred_region
      %s95 = ssub.s32 %s8, 1
      // Predicated region
      $region13: #{conv_block_forward.1} parent=11 // pred_check
        %p96 = pneg %p55
      $region14: #{conv_block_forward.1} parent=11 // pred_check_branch
        %98 = sbr.rel (%p96) target = $region16
      $region15: #{conv_block_forward.1} parent=11 // pred_region
        _
      $region16: #{conv_block_forward.1} parent=11 // pred_fallthru
        _
    $region12: #{conv_block_forward.1} parent=5 // pred_fallthru
      _
    %p99 = scmp.lt.s32.totalorder %s8, 2
    // Predicated region
    $region17: #{conv_block_forward.1} parent=5 // pred_check
      %p100 = pneg %p99
    $region18: #{conv_block_forward.1} parent=5 // pred_check_branch
      %102 = sbr.rel (%p100) target = $region20
    $region19: #{conv_block_forward.1} parent=5 // pred_region
      // Predicated region
      $region21: #{conv_block_forward.1} parent=19 // pred_check
        %p103 = pneg %p28
      $region22: #{conv_block_forward.1} parent=19 // pred_check_branch
        %105 = sbr.rel (%p103) target = $region24
      $region23: #{conv_block_forward.1} parent=19 // pred_region
        %p106 = scmp.lt.s32.totalorder %s8, 1
        %s107 = scalar_select %p106, %s8, 1
        %s108 = smul.addr %s107, 10
        %s109 = smul.addr %s108, 4
        %s110 = scalar_lea.vmem %s0, %s109
      $region24: #{conv_block_forward.1} parent=19 // pred_fallthru
        _
    $region20: #{conv_block_forward.1} parent=5 // pred_fallthru
      _
    %p111 = scmp.le.s32.totalorder 1, %s8
    %p112 = scmp.lt.s32.totalorder %s8, 3
    %p113 = pnand %p111, %p112
    %p114 = pneg %p113
    // Predicated region
    $region25: #{conv_block_forward.1} parent=5 // pred_check
      _
    $region26: #{conv_block_forward.1} parent=5 // pred_check_branch
      %116 = sbr.rel (%p113) target = $region28
    $region27: #{conv_block_forward.1} parent=5 // pred_region
      %s117 = ssub.s32 %s8, 1
      %p118 = scmp.lt.s32.totalorder %s13, 1
      %s119 = scalar_select %p118, %s13, 1
      %s120 = smul.addr %s119, 10
      %s121 = smul.addr %s120, 4
      %s122 = scalar_lea.vmem %s0, %s121
      %p123 = pneg %p34
      %p124 = pneg %p31
      %p125 = pneg %p55
      %p126 = pneg %p52
      %p127 = pneg %p81
      %p128 = pneg %p78
      %p129 = scmp.lt.s32.totalorder %s13, 1
      %s130 = scalar_select %p129, %s13, 1
      %s131 = smul.addr %s130, 2
      %s132 = smul.addr %s131, 8
      %s133 = scalar_lea.vmem %s2, %s132
      %p134 = scmp.lt.s32.totalorder %s13, 1
      %s135 = scalar_select %p134, %s13, 1
      %s136 = smul.addr %s135, 10
      %s137 = smul.addr %s136, 4
      %s138 = scalar_lea.vmem %s0, %s137
      %p139 = scmp.lt.s32.totalorder %s13, 1
      %s140 = scalar_select %p139, %s13, 1
      %s141 = smul.addr %s140, 2
      %s142 = smul.addr %s141, 8
      %s143 = scalar_lea.vmem %s2, %s142
      %v145 = vld [vmem:[%s1] sm:$0xf]
      %v146 = vld [vmem:[%s138] sm:$0xff]
      %v147 = vld [vmem:[%s138 + $0x8] sm:$0xff]
      %v148 = vld [vmem:[%s138 + $0x10] sm:$0xff]
      %v149 = vld [vmem:[%s138 + $0x18] sm:$0xff]
      %v150 = vld [vmem:[%s138 + $0x20] sm:$0x33]
      %v156 = vunpack.c.l.b16 %v146
      %v157 = vunpack.c.h.b16 %v146
      %v158 = vunpack.c.l.b16 %v147
      %v159 = vunpack.c.h.b16 %v147
      %v160 = vunpack.c.l.b16 %v148
      %v161 = vunpack.c.h.b16 %v148
      %v162 = vunpack.c.l.b16 %v149
      %v163 = vunpack.c.h.b16 %v149
      %v164 = vunpack.c.l.b16 %v150
      %v165 = vunpack.c.h.b16 %v150
      %v166 = vpack.c.b16 %v158, %v156
      %v167 = vpack.c.b16 %v159, %v157
      %v168 = vpack.c.b16 %v162, %v160
      %v169 = vpack.c.b16 %v163, %v161
      %v170 = vpack.c.b16 %v164, %v164
      %v171 = vpack.c.b16 %v165, %v165
      %vm176 = vcmask 293888
      %v178 = vsel %vm176, %v145, 0
      %vm180 = vcmask 1041408
      %v182 = vsel %vm180, %v170, 0
      %v185 = vsel %vm180, %v171, 0
      %187 = vmatpush.bf16.msra.mxu0 0
      %188 = vmatpush.bf16.msra.mxu0 0
      %189 = vmatpush.bf16.msra.mxu0 0
      %190 = vmatpush.bf16.msra.mxu0 0
      %191 = vmatpush.bf16.msra.mxu0 0
      %192 = vmatpush.bf16.msra.mxu0 %v182
      %193 = vmatpush.bf16.msra.mxu0 %v168
      %194 = vmatpush.bf16.msra.mxu0 %v166
      %195 = vmatmul.bf16.gmra.mxu0 %v178
      %v196 = vpop.f32.mrf.mxu0
      %v197 = vadd.f32 0.0, %v196
      %v198 = vpop.f32.mrf.mxu0
      %199 = vdwg.mxu0
      %200 = vmatpush.bf16.msra.mxu0 0
      %201 = vmatpush.bf16.msra.mxu0 0
      %202 = vmatpush.bf16.msra.mxu0 0
      %203 = vmatpush.bf16.msra.mxu0 0
      %204 = vmatpush.bf16.msra.mxu0 0
      %205 = vmatpush.bf16.msra.mxu0 %v185
      %206 = vmatpush.bf16.msra.mxu0 %v169
      %207 = vmatpush.bf16.msra.mxu0 %v167
      %208 = vmatmul.bf16.gmra.mxu0 %v178
      %v209 = vpop.f32.mrf.mxu0
      %v210 = vadd.f32 0.0, %v209
      %v211 = vpop.f32.mrf.mxu0
      %212 = vdwg.mxu0
      %v213 = vadd.f32 %v197, %v210
      %214 = vadd.xlane.f32.xlu0 %v213
      %v215 = vpop.xlane.xlu0 %214
      %v216 = vrcp.pop 256.0
      %v217 = vmul.f32 256.0, %v216
      %v218 = vsub.f32 1.0, %v217
      %v219 = vmul.f32 %v216, %v218
      %v220 = vadd.f32 %v216, %v219
      %vm221 = vweird.f32 %v216
      %v222 = vsel %vm221, %v216, %v220
      %v223 = vmul.f32 %v215, %v222
      %v224 = vsub.f32 %v197, %v223
      %v225 = vsub.f32 %v210, %v223
      %v226 = vmul.f32 %v224, %v224
      %v227 = vmul.f32 %v225, %v225
      %v228 = vadd.f32 %v226, %v227
      %229 = vadd.xlane.f32.xlu0 %v228
      %v230 = vpop.xlane.xlu0 %229
      %v231 = vmul.f32 %v230, %v222
      %v232 = vadd.f32 %v231, 1e-05
      %v233 = vrsqrt.pop %v232
      %v234 = vmul.f32 %v233, %v232
      %v235 = vmul.f32 %v234, %v233
      %v236 = vmul.f32 0.5, %v235
      %v237 = vsub.f32 1.5, %v236
      %v238 = vmul.f32 %v233, %v237
      %vm239 = vweird.f32 %v232
      %vm240 = vweird.f32 %v233
      %vm241 = vmor %vm239, %vm240
      %v242 = vsel %vm241, %v233, %v238
      %v243 = vmul.f32 %v224, %v242
      %v244 = vmul.f32 %v225, %v242
      %vm245 = vcmp.ge.f32.partialorder %v243, 0.0
      %vm246 = vcmp.ge.f32.partialorder %v244, 0.0
      %v247 = vmul.f32 %v243, 0.2
      %v248 = vmul.f32 %v244, 0.2
      %v249 = vsel %vm245, %v243, %v247
      %v250 = vsel %vm246, %v244, %v248
      %251 = vst [vmem:[%s143] sm:$0xff] %v249
      %252 = vst [vmem:[%s143 + $0x8] sm:$0xff] %v250
      %p253 = scmp.lt.s32.totalorder %s13, 1
      %s254 = scalar_select %p253, %s13, 1
      %s255 = smul.addr %s254, 2
      %s256 = smul.addr %s255, 8
      %s257 = scalar_lea.vmem %s2, %s256
      // Predicated region
      $region29: #{conv_block_forward.1} parent=27 // pred_check
        %p258 = pneg %p78
      $region30: #{conv_block_forward.1} parent=27 // pred_check_branch
        %260 = sbr.rel (%p258) target = $region32
      $region31: #{conv_block_forward.1} parent=27 // pred_region
        _
      $region32: #{conv_block_forward.1} parent=27 // pred_fallthru
        _
    $region28: #{conv_block_forward.1} parent=5 // pred_fallthru
      _
    %p261 = scmp.le.s32.totalorder 2, %s8
    // Predicated region
    $region33: #{conv_block_forward.1} parent=5 // pred_check
      %p262 = pneg %p261
    $region34: #{conv_block_forward.1} parent=5 // pred_check_branch
      %264 = sbr.rel (%p262) target = $region36
    $region35: #{conv_block_forward.1} parent=5 // pred_region
      %s265 = ssub.s32 %s8, 2
      // Predicated region
      $region37: #{conv_block_forward.1} parent=35 // pred_check
        %p266 = pneg %p84
      $region38: #{conv_block_forward.1} parent=35 // pred_check_branch
        %268 = sbr.rel (%p266) target = $region40
      $region39: #{conv_block_forward.1} parent=35 // pred_region
        %p269 = scmp.lt.s32.totalorder %s14, 1
        %s270 = scalar_select %p269, %s14, 1
        %s271 = smul.addr %s270, 2
        %s272 = smul.addr %s271, 8
        %s273 = scalar_lea.vmem %s2, %s272
      $region40: #{conv_block_forward.1} parent=35 // pred_fallthru
        _
    $region36: #{conv_block_forward.1} parent=5 // pred_fallthru
      _
  $region6: #{conv_block_forward.1} parent=0 // loop_footer
    %s12 = sadd.s32 1, %s8
  $region7: #{conv_block_forward.1} parent=0 // loop_footer_branch
    %7 = sbr.rel target = $region3
  $region8: #{conv_block_forward.1} parent=0 // loop_exit
    _

</llo_original>
